<compile_context>
chip_gen: v5e
topology: v5e:2x2
jax: 0.10.0
libtpu: 0.0.40
codegen_flags: <defaults>
</compile_context>

<pallas_src>
import jax
import jax.numpy as jnp
from jax.experimental import pallas as pl
from jax.experimental.pallas import tpu as pltpu


# ----------------------------------------------------------------------------
# fused Pallas kernel: conv1 -> relu -> LN -> conv2 -> relu -> LN -> proj
# ----------------------------------------------------------------------------
def _make_duration_predictor_kernel(c_in, c_f, T, K, eps=1e-5):
    pad = K // 2

    def kernel(x_ref, m_ref, w1_ref, w2_ref, p_ref, o_ref):
        mask = m_ref[...]                                         # (1, T)

        # ---- hoisted halo machinery (computed once, reused by both convs) ----
        col = jax.lax.broadcasted_iota(jnp.int32, (1, T), 1)      # lane index
        edge = {}
        for d in range(-pad, pad + 1):
            if d > 0:
                edge[d] = col < (T - d)
            elif d < 0:
                edge[d] = col >= (-d)

        def shift(v, d):
            # shifted[:, t] = v[:, t + d]  (zero outside [0, T)) -- in-kernel
            # halo via an XLU lane rotate + precomputed edge mask; no pre-padded
            # HBM copy of the activation is ever shipped.
            if d == 0:
                return v
            r = pltpu.roll(v, shift=(-d) % T, axis=1)
            return jnp.where(edge[d], r, 0.0)

        def conv1d(v, w_ref_, b):
            # Full 'same'-padded Conv1d as ONE MXU dot: stack the K shifted
            # copies along the contraction axis -> (K*Cin, T), contract against
            # the fused (Cout, K*Cin) weight.  Bias added once at the end.
            rhs = jnp.concatenate([shift(v, k - pad) for k in range(K)], axis=0)
            return jnp.dot(w_ref_[...], rhs,
                           preferred_element_type=jnp.float32) + b

        def layer_norm(v):
            # normalize over the channel axis (axis 0), biased variance;
            # the affine (gamma/beta) is applied by the caller (or folded).
            mu = jnp.mean(v, axis=0, keepdims=True)
            var = jnp.mean((v - mu) ** 2, axis=0, keepdims=True)
            return (v - mu) * jax.lax.rsqrt(var + eps)

        # packed per-channel parameters: one DMA instead of eight.
        b1 = p_ref[:, 0:1]
        g1 = p_ref[:, 1:2]
        be1 = p_ref[:, 2:3]
        b2 = p_ref[:, 3:4]
        wp_eff = p_ref[:, 4:5]        # wp * gamma2   (LN2 affine folded in)
        b_eff = p_ref[0:1, 5:6]       # bp + sum(wp * beta2)

        x = x_ref[...] * mask                                     # (c_in, T)

        h = conv1d(x, w1_ref, b1)
        h = jnp.maximum(h, 0.0)
        h = g1 * layer_norm(h) + be1
        # TODO(synk): nn.Dropout is identity here (inference / eval mode assumed).

        h = conv1d(h * mask, w2_ref, b2)
        h = jnp.maximum(h, 0.0)
        h = layer_norm(h)             # LN2 affine + final mask folded into proj

        # 1x1 proj to a single channel: VPU multiply + sublane reduce
        # (no degenerate (1, C) matmul / MXU fill-drain).
        out = jnp.sum(wp_eff * h, axis=0, keepdims=True) + b_eff
        o_ref[...] = out * mask

    return kernel


def duration_predictor_forward(params, x, x_mask):
    """x: (B, in_channels, T), x_mask: (B, 1, T) -> (B, 1, T)."""
    B, c_in, T = x.shape
    K, c_f, _ = params['w1'].shape

    # --- wrapper-side layout plumbing (tiny, fused away by XLA) ---
    # fused conv weights: (K, Cout, Cin) -> (Cout, K*Cin), tap-major contraction
    w1f = jnp.transpose(params['w1'], (1, 0, 2)).reshape(c_f, K * c_in)
    w2f = jnp.transpose(params['w2'], (1, 0, 2)).reshape(c_f, K * c_f)
    # LN2 affine + proj fold: wp·(g2*n + be2) == (wp*g2)·n + sum(wp*be2)
    wp_eff = params['wp'] * params['g2']
    b_eff = params['bp'][0, 0] + jnp.sum(params['wp'] * params['be2'])
    pvec = jnp.concatenate(
        [params['b1'], params['g1'], params['be1'], params['b2'], wp_eff,
         jnp.broadcast_to(jnp.reshape(b_eff, (1, 1)), (c_f, 1))], axis=1)

    kern = _make_duration_predictor_kernel(c_in, c_f, T, K)
    full2 = lambda b: (0, 0)
    return pl.pallas_call(
        kern,
        out_shape=jax.ShapeDtypeStruct((B, 1, T), jnp.float32),
        grid=(B,),
        in_specs=[
            pl.BlockSpec((None, c_in, T), lambda b: (b, 0, 0)),   # x
            pl.BlockSpec((None, 1, T), lambda b: (b, 0, 0)),      # x_mask
            pl.BlockSpec((c_f, K * c_in), full2),                 # fused conv1 W
            pl.BlockSpec((c_f, K * c_f), full2),                  # fused conv2 W
            pl.BlockSpec((c_f, 6), full2),                        # packed params
        ],
        out_specs=pl.BlockSpec((None, 1, T), lambda b: (b, 0, 0)),
        compiler_params=pltpu.CompilerParams(dimension_semantics=("parallel",)),
    )(x, x_mask, w1f, w2f, pvec)


# ----------------------------------------------------------------------------
# pure-JAX reference (for correctness check; uses the UNFUSED parameters)
# ----------------------------------------------------------------------------
def duration_predictor_reference(params, x, x_mask, eps=1e-5):
    K = params['w1'].shape[0]
    pad = K // 2
    T = x.shape[2]
    hi = jax.lax.Precision.HIGHEST

    def conv1d(v, w, b):                      # w: (K, Cout, Cin), b: (Cout, 1)
        vp = jnp.pad(v, ((0, 0), (0, 0), (pad, pad)))
        out = jnp.zeros((v.shape[0], w.shape[1], T), jnp.float32) + b[None]
        for k in range(K):
            out = out + jnp.einsum('oc,bct->bot', w[k], vp[:, :, k:k + T],
                                   precision=hi)
        return out

    def ln(v, gamma, beta):
        mu = jnp.mean(v, axis=1, keepdims=True)
        var = jnp.mean((v - mu) ** 2, axis=1, keepdims=True)
        return gamma[None] * (v - mu) * jax.lax.rsqrt(var + eps) + beta[None]

    h = conv1d(x * x_mask, params['w1'], params['b1'])
    h = ln(jnp.maximum(h, 0.0), params['g1'], params['be1'])
    h = conv1d(h * x_mask, params['w2'], params['b2'])
    h = ln(jnp.maximum(h, 0.0), params['g2'], params['be2'])
    out = jnp.sum(params['wp'][None] * (h * x_mask), axis=1, keepdims=True) + params['bp'][None]
    return out * x_mask


# ----------------------------------------------------------------------------
# deterministic parameter init (shapes follow the module's __init__)
# ----------------------------------------------------------------------------
def init_params(key, in_channels, filter_channels, kernel_size):
    keys = jax.random.split(key, 6)
    nrm = lambda k, shape, s: s * jax.random.normal(k, shape, jnp.float32)
    # NOTE: PyTorch Conv1d weight is (Cout, Cin, K); stored here as (K, Cout, Cin)
    # (i.e. w_torch.permute(2, 0, 1)) so taps sit on the leading axis.
    return dict(
        w1=nrm(keys[0], (kernel_size, filter_channels, in_channels), 0.3),
        b1=nrm(keys[1], (filter_channels, 1), 0.05),
        g1=jnp.ones((filter_channels, 1), jnp.float32),
        be1=jnp.zeros((filter_channels, 1), jnp.float32),
        w2=nrm(keys[2], (kernel_size, filter_channels, filter_channels), 0.3),
        b2=nrm(keys[3], (filter_channels, 1), 0.05),
        g2=jnp.ones((filter_channels, 1), jnp.float32) * 1.1,
        be2=jnp.full((filter_channels, 1), 0.05, jnp.float32),
        wp=nrm(keys[4], (filter_channels, 1), 0.3),   # proj: Conv1d(filter, 1, 1)
        bp=nrm(keys[5], (1, 1), 0.05),
    )


# ----------------------------------------------------------------------------
# main
# ----------------------------------------------------------------------------
if __name__ == "__main__":
    # T chosen as a multiple of 128 so every block is lane-dense; still a small
    # demo problem size overall.
    B, C_IN, C_F, T, K = 2, 8, 16, 128, 3

    key = jax.random.PRNGKey(0)
    k_p, k_x = jax.random.split(key)
    params = init_params(k_p, C_IN, C_F, K)

    x = jax.random.normal(k_x, (B, C_IN, T), jnp.float32)
    lengths = jnp.array([T, T - 29], jnp.int32)
    x_mask = (jnp.arange(T)[None, :] < lengths[:, None]).astype(jnp.float32)[:, None, :]
    # gin_channels = lin_channels = emoin_channels = 0 -> no g / l / emo conditioning.

    fwd = jax.jit(duration_predictor_forward)
    out = fwd(params, x, x_mask)
    jax.block_until_ready(out)

    ref = duration_predictor_reference(params, x, x_mask)
    assert out.shape == (B, 1, T), out.shape
    assert bool(jnp.isfinite(out).all())
    max_err = float(jnp.max(jnp.abs(out - ref)))
    # all-f32 path -> tight tolerance (catches halo / fold / precision bugs)
    assert max_err < 1e-4, f"max abs error vs reference: {max_err}"
    print("KERNEL_OK")
</pallas_src>

<mosaic_0001>
module attributes {stable_mosaic.version = 11 : i64} {
  func.func @kernel(%arg0: i32, %arg1: memref<1x8x128xf32, #tpu.memory_space<vmem>>, %arg2: memref<1x1x128xf32, #tpu.memory_space<vmem>>, %arg3: memref<16x24xf32, #tpu.memory_space<vmem>>, %arg4: memref<16x48xf32, #tpu.memory_space<vmem>>, %arg5: memref<16x6xf32, #tpu.memory_space<vmem>>, %arg6: memref<1x1x128xf32, #tpu.memory_space<vmem>>) attributes {dimension_semantics = [#tpu.dimension_semantics<parallel>], iteration_bounds = array<i64: 2>, scalar_prefetch = 0 : i64, scratch_operands = 0 : i64, tpu.core_type = #tpu.core_type<tc>, window_params = [{transform_indices = @transform_0, window_bounds = array<i64: 1, 8, 128>}, {transform_indices = @transform_1, window_bounds = array<i64: 1, 1, 128>}, {pipeline_mode = #tpu.pipeline_mode<synchronous>, transform_indices = @transform_2, window_bounds = array<i64: 16, 24>}, {pipeline_mode = #tpu.pipeline_mode<synchronous>, transform_indices = @transform_3, window_bounds = array<i64: 16, 48>}, {pipeline_mode = #tpu.pipeline_mode<synchronous>, transform_indices = @transform_4, window_bounds = array<i64: 16, 6>}, {transform_indices = @transform_5, window_bounds = array<i64: 1, 1, 128>}]} {
    %c0 = arith.constant 0 : index
    %c0_0 = arith.constant 0 : index
    %c0_1 = arith.constant 0 : index
    %0 = vector.load %arg2[%c0, %c0_0, %c0_1] : memref<1x1x128xf32, #tpu.memory_space<vmem>>, vector<1x1x128xf32>
    %1 = vector.shape_cast %0 : vector<1x1x128xf32> to vector<1x128xf32>
    %2 = tpu.iota {dimensions = array<i32: 1>} : vector<1x128xi32>
    %c1_i32 = arith.constant 1 : i32
    %3 = vector.broadcast %c1_i32 : i32 to vector<1x128xi32>
    %4 = arith.cmpi sge, %2, %3 : vector<1x128xi32>
    %c127_i32 = arith.constant 127 : i32
    %5 = vector.broadcast %c127_i32 : i32 to vector<1x128xi32>
    %6 = arith.cmpi slt, %2, %5 : vector<1x128xi32>
    %c0_2 = arith.constant 0 : index
    %c0_3 = arith.constant 0 : index
    %7 = vector.load %arg5[%c0_2, %c0_3] : memref<16x6xf32, #tpu.memory_space<vmem>>, vector<16x1xf32>
    %c0_4 = arith.constant 0 : index
    %c1 = arith.constant 1 : index
    %8 = vector.load %arg5[%c0_4, %c1] : memref<16x6xf32, #tpu.memory_space<vmem>>, vector<16x1xf32>
    %c0_5 = arith.constant 0 : index
    %c2 = arith.constant 2 : index
    %9 = vector.load %arg5[%c0_5, %c2] : memref<16x6xf32, #tpu.memory_space<vmem>>, vector<16x1xf32>
    %c0_6 = arith.constant 0 : index
    %c3 = arith.constant 3 : index
    %10 = vector.load %arg5[%c0_6, %c3] : memref<16x6xf32, #tpu.memory_space<vmem>>, vector<16x1xf32>
    %c0_7 = arith.constant 0 : index
    %c4 = arith.constant 4 : index
    %11 = vector.load %arg5[%c0_7, %c4] : memref<16x6xf32, #tpu.memory_space<vmem>>, vector<16x1xf32>
    %c0_8 = arith.constant 0 : index
    %c5 = arith.constant 5 : index
    %12 = vector.load %arg5[%c0_8, %c5] : memref<16x6xf32, #tpu.memory_space<vmem>>, vector<1x1xf32>
    %c0_9 = arith.constant 0 : index
    %c0_10 = arith.constant 0 : index
    %c0_11 = arith.constant 0 : index
    %13 = vector.load %arg1[%c0_9, %c0_10, %c0_11] : memref<1x8x128xf32, #tpu.memory_space<vmem>>, vector<1x8x128xf32>
    %14 = vector.shape_cast %13 : vector<1x8x128xf32> to vector<8x128xf32>
    %15 = vector.broadcast %1 : vector<1x128xf32> to vector<8x128xf32>
    %16 = arith.mulf %14, %15 : vector<8x128xf32>
    %c1_i32_12 = arith.constant 1 : i32
    %17 = tpu.dynamic_rotate %16 by %c1_i32_12 dim 1 : vector<8x128xf32>, i32 -> vector<8x128xf32>
    %cst = arith.constant 0.000000e+00 : f32
    %18 = vector.shape_cast %4 : vector<1x128xi1> to vector<1x128xi1>
    %19 = vector.broadcast %18 : vector<1x128xi1> to vector<8x128xi1>
    %20 = vector.broadcast %cst : f32 to vector<8x128xf32>
    %21 = arith.select %19, %17, %20 : vector<8x128xi1>, vector<8x128xf32>
    %c127_i32_13 = arith.constant 127 : i32
    %22 = tpu.dynamic_rotate %16 by %c127_i32_13 dim 1 : vector<8x128xf32>, i32 -> vector<8x128xf32>
    %cst_14 = arith.constant 0.000000e+00 : f32
    %23 = vector.shape_cast %6 : vector<1x128xi1> to vector<1x128xi1>
    %24 = vector.broadcast %23 : vector<1x128xi1> to vector<8x128xi1>
    %25 = vector.broadcast %cst_14 : f32 to vector<8x128xf32>
    %26 = arith.select %24, %22, %25 : vector<8x128xi1>, vector<8x128xf32>
    %27 = tpu.concatenate %21, %16, %26 in 0 : vector<8x128xf32>, vector<8x128xf32>, vector<8x128xf32> -> vector<24x128xf32>
    %c0_15 = arith.constant 0 : index
    %c0_16 = arith.constant 0 : index
    %28 = vector.load %arg3[%c0_15, %c0_16] : memref<16x24xf32, #tpu.memory_space<vmem>>, vector<16x24xf32>
    %cst_17 = arith.constant dense<0.000000e+00> : vector<16x128xf32>
    %29 = tpu.matmul %28, %27, %cst_17 {dimension_numbers = #tpu.dot_dimension_numbers<[1], [0], [0], [1], [0, 0, 1, 1], [], []>} : vector<16x24xf32>, vector<24x128xf32>, vector<16x128xf32> -> vector<16x128xf32>
    %30 = vector.broadcast %7 : vector<16x1xf32> to vector<16x128xf32>
    %31 = arith.addf %29, %30 : vector<16x128xf32>
    %cst_18 = arith.constant 0.000000e+00 : f32
    %32 = vector.broadcast %cst_18 : f32 to vector<16x128xf32>
    %33 = arith.maximumf %31, %32 : vector<16x128xf32>
    %cst_19 = arith.constant dense<0.000000e+00> : vector<128xf32>
    %34 = vector.multi_reduction <add>, %33, %cst_19 [0] : vector<16x128xf32> to vector<128xf32>
    %35 = vector.shape_cast %34 : vector<128xf32> to vector<1x128xf32>
    %cst_20 = arith.constant 1.600000e+01 : f32
    %36 = vector.broadcast %cst_20 : f32 to vector<1x128xf32>
    %37 = arith.divf %35, %36 : vector<1x128xf32>
    %38 = vector.broadcast %37 : vector<1x128xf32> to vector<16x128xf32>
    %39 = arith.subf %33, %38 : vector<16x128xf32>
    %40 = arith.mulf %39, %39 : vector<16x128xf32>
    %cst_21 = arith.constant dense<0.000000e+00> : vector<128xf32>
    %41 = vector.multi_reduction <add>, %40, %cst_21 [0] : vector<16x128xf32> to vector<128xf32>
    %42 = vector.shape_cast %41 : vector<128xf32> to vector<1x128xf32>
    %cst_22 = arith.constant 1.600000e+01 : f32
    %43 = vector.broadcast %cst_22 : f32 to vector<1x128xf32>
    %44 = arith.divf %42, %43 : vector<1x128xf32>
    %45 = vector.broadcast %37 : vector<1x128xf32> to vector<16x128xf32>
    %46 = arith.subf %33, %45 : vector<16x128xf32>
    %cst_23 = arith.constant 9.99999974E-6 : f32
    %47 = vector.broadcast %cst_23 : f32 to vector<1x128xf32>
    %48 = arith.addf %44, %47 : vector<1x128xf32>
    %49 = math.rsqrt %48 : vector<1x128xf32>
    %50 = vector.broadcast %49 : vector<1x128xf32> to vector<16x128xf32>
    %51 = arith.mulf %46, %50 : vector<16x128xf32>
    %52 = vector.broadcast %8 : vector<16x1xf32> to vector<16x128xf32>
    %53 = arith.mulf %52, %51 : vector<16x128xf32>
    %54 = vector.broadcast %9 : vector<16x1xf32> to vector<16x128xf32>
    %55 = arith.addf %53, %54 : vector<16x128xf32>
    %56 = vector.broadcast %1 : vector<1x128xf32> to vector<16x128xf32>
    %57 = arith.mulf %55, %56 : vector<16x128xf32>
    %c1_i32_24 = arith.constant 1 : i32
    %58 = tpu.dynamic_rotate %57 by %c1_i32_24 dim 1 : vector<16x128xf32>, i32 -> vector<16x128xf32>
    %cst_25 = arith.constant 0.000000e+00 : f32
    %59 = vector.shape_cast %4 : vector<1x128xi1> to vector<1x128xi1>
    %60 = vector.broadcast %59 : vector<1x128xi1> to vector<16x128xi1>
    %61 = vector.broadcast %cst_25 : f32 to vector<16x128xf32>
    %62 = arith.select %60, %58, %61 : vector<16x128xi1>, vector<16x128xf32>
    %c127_i32_26 = arith.constant 127 : i32
    %63 = tpu.dynamic_rotate %57 by %c127_i32_26 dim 1 : vector<16x128xf32>, i32 -> vector<16x128xf32>
    %cst_27 = arith.constant 0.000000e+00 : f32
    %64 = vector.shape_cast %6 : vector<1x128xi1> to vector<1x128xi1>
    %65 = vector.broadcast %64 : vector<1x128xi1> to vector<16x128xi1>
    %66 = vector.broadcast %cst_27 : f32 to vector<16x128xf32>
    %67 = arith.select %65, %63, %66 : vector<16x128xi1>, vector<16x128xf32>
    %68 = tpu.concatenate %62, %57, %67 in 0 : vector<16x128xf32>, vector<16x128xf32>, vector<16x128xf32> -> vector<48x128xf32>
    %c0_28 = arith.constant 0 : index
    %c0_29 = arith.constant 0 : index
    %69 = vector.load %arg4[%c0_28, %c0_29] : memref<16x48xf32, #tpu.memory_space<vmem>>, vector<16x48xf32>
    %cst_30 = arith.constant dense<0.000000e+00> : vector<16x128xf32>
    %70 = tpu.matmul %69, %68, %cst_30 {dimension_numbers = #tpu.dot_dimension_numbers<[1], [0], [0], [1], [0, 0, 1, 1], [], []>} : vector<16x48xf32>, vector<48x128xf32>, vector<16x128xf32> -> vector<16x128xf32>
    %71 = vector.broadcast %10 : vector<16x1xf32> to vector<16x128xf32>
    %72 = arith.addf %70, %71 : vector<16x128xf32>
    %cst_31 = arith.constant 0.000000e+00 : f32
    %73 = vector.broadcast %cst_31 : f32 to vector<16x128xf32>
    %74 = arith.maximumf %72, %73 : vector<16x128xf32>
    %cst_32 = arith.constant dense<0.000000e+00> : vector<128xf32>
    %75 = vector.multi_reduction <add>, %74, %cst_32 [0] : vector<16x128xf32> to vector<128xf32>
    %76 = vector.shape_cast %75 : vector<128xf32> to vector<1x128xf32>
    %cst_33 = arith.constant 1.600000e+01 : f32
    %77 = vector.broadcast %cst_33 : f32 to vector<1x128xf32>
    %78 = arith.divf %76, %77 : vector<1x128xf32>
    %79 = vector.broadcast %78 : vector<1x128xf32> to vector<16x128xf32>
    %80 = arith.subf %74, %79 : vector<16x128xf32>
    %81 = arith.mulf %80, %80 : vector<16x128xf32>
    %cst_34 = arith.constant dense<0.000000e+00> : vector<128xf32>
    %82 = vector.multi_reduction <add>, %81, %cst_34 [0] : vector<16x128xf32> to vector<128xf32>
    %83 = vector.shape_cast %82 : vector<128xf32> to vector<1x128xf32>
    %cst_35 = arith.constant 1.600000e+01 : f32
    %84 = vector.broadcast %cst_35 : f32 to vector<1x128xf32>
    %85 = arith.divf %83, %84 : vector<1x128xf32>
    %86 = vector.broadcast %78 : vector<1x128xf32> to vector<16x128xf32>
    %87 = arith.subf %74, %86 : vector<16x128xf32>
    %cst_36 = arith.constant 9.99999974E-6 : f32
    %88 = vector.broadcast %cst_36 : f32 to vector<1x128xf32>
    %89 = arith.addf %85, %88 : vector<1x128xf32>
    %90 = math.rsqrt %89 : vector<1x128xf32>
    %91 = vector.broadcast %90 : vector<1x128xf32> to vector<16x128xf32>
    %92 = arith.mulf %87, %91 : vector<16x128xf32>
    %93 = vector.broadcast %11 : vector<16x1xf32> to vector<16x128xf32>
    %94 = arith.mulf %93, %92 : vector<16x128xf32>
    %cst_37 = arith.constant dense<0.000000e+00> : vector<128xf32>
    %95 = vector.multi_reduction <add>, %94, %cst_37 [0] : vector<16x128xf32> to vector<128xf32>
    %96 = vector.shape_cast %95 : vector<128xf32> to vector<1x128xf32>
    %97 = vector.broadcast %12 : vector<1x1xf32> to vector<1x128xf32>
    %98 = arith.addf %96, %97 : vector<1x128xf32>
    %99 = arith.mulf %98, %1 : vector<1x128xf32>
    %c0_38 = arith.constant 0 : index
    %c0_39 = arith.constant 0 : index
    %c0_40 = arith.constant 0 : index
    %100 = vector.load %arg6[%c0_38, %c0_39, %c0_40] : memref<1x1x128xf32, #tpu.memory_space<vmem>>, vector<1x1x128xf32>
    %101 = vector.shape_cast %100 : vector<1x1x128xf32> to vector<1x128xf32>
    %102 = vector.shape_cast %99 : vector<1x128xf32> to vector<1x1x128xf32>
    tpu.vector_store %arg6[%c0_38, %c0_39, %c0_40], %102 {strides = array<i32>} : memref<1x1x128xf32, #tpu.memory_space<vmem>>, vector<1x1x128xf32>,
    return
  }
  func.func @transform_0(%arg0: i32) -> (i32, i32, i32) {
    %c0_i32 = arith.constant 0 : i32
    %c0_i32_0 = arith.constant 0 : i32
    %c0_i32_1 = arith.constant 0 : i32
    return %arg0, %c0_i32, %c0_i32_0 : i32, i32, i32
  }
  func.func @transform_1(%arg0: i32) -> (i32, i32, i32) {
    %c0_i32 = arith.constant 0 : i32
    %c0_i32_0 = arith.constant 0 : i32
    %c0_i32_1 = arith.constant 0 : i32
    return %arg0, %c0_i32, %c0_i32_0 : i32, i32, i32
  }
  func.func @transform_2(%arg0: i32) -> (i32, i32) {
    %c0_i32 = arith.constant 0 : i32
    %c0_i32_0 = arith.constant 0 : i32
    %c0_i32_1 = arith.constant 0 : i32
    return %c0_i32, %c0_i32_0 : i32, i32
  }
  func.func @transform_3(%arg0: i32) -> (i32, i32) {
    %c0_i32 = arith.constant 0 : i32
    %c0_i32_0 = arith.constant 0 : i32
    %c0_i32_1 = arith.constant 0 : i32
    return %c0_i32, %c0_i32_0 : i32, i32
  }
  func.func @transform_4(%arg0: i32) -> (i32, i32) {
    %c0_i32 = arith.constant 0 : i32
    %c0_i32_0 = arith.constant 0 : i32
    %c0_i32_1 = arith.constant 0 : i32
    return %c0_i32, %c0_i32_0 : i32, i32
  }
  func.func @transform_5(%arg0: i32) -> (i32, i32, i32) {
    %c0_i32 = arith.constant 0 : i32
    %c0_i32_0 = arith.constant 0 : i32
    %c0_i32_1 = arith.constant 0 : i32
    return %arg0, %c0_i32, %c0_i32_0 : i32, i32, i32
  }
}

</mosaic_0001>

<llo_original>
// kernel: duration_predictor_forward.1
$region0: #{duration_predictor_forward.1}
  #allocation0 [shape = 'u32[]', space=smem, size = 0x4, offset = 0x4, fixed_abs, tag = 'smem constant byte address 0x4 - core index']
  #allocation1 [shape = 'u32[72,128]{1,0:T(1,128)}', space=vmem, size = 0x9000, scoped, tag = 'internal scratch']
  %s0 = inlined_call_operand.vmem [shape: f32[2,8,128], index: 0, kind: input, shape index: {}]
  %s1 = inlined_call_operand.vmem [shape: f32[2,1,128], index: 1, kind: input, shape index: {}]
  %s2 = inlined_call_operand.vmem [shape: f32[16,24], index: 2, kind: input, shape index: {}]
  %s3 = inlined_call_operand.vmem [shape: f32[16,48], index: 3, kind: input, shape index: {}]
  %s4 = inlined_call_operand.vmem [shape: f32[16,6], index: 4, kind: input, shape index: {}]
  %s5 = inlined_call_operand.hbm [shape: f32[2,1,128], index: 5, kind: output, shape index: {}]
  %s6 = sld [smem:[#allocation0]]
  $region53: #{duration_predictor_forward.1} parent=0
    _
  %s8 = ssub.s32 1, %s6
  %s9 = scalar_select 0, %s8, %s6
  $region1: #{duration_predictor_forward.1} parent=0
    #allocation2 [shape = 'u8[1024]{0}', space=vmem, size = 0x400, scoped, tag = 'output window, operand 0']
    #allocation3 [shape = 's32[2]{0}', space=sflag, size = 0x8, scoped, tag = 'scoped memory for duration_predictor_forward.1']
    %10 = vsyncpa [#allocation3], 0
    %s11 = scalar_lea.sflag [#allocation3], 1
    %12 = vsyncpa %s11, 0
    loop: start=0, step=1, limit=4
    $region2: #{duration_predictor_forward.1} parent=1 // loop_pre_header
      _
    $region3: #{duration_predictor_forward.1} parent=1 // loop_header
      %s14 = sphi 0, %s18
      %p15 = scmp.ge.s32.totalorder %s14, 4
      %s24 = sphi 0, %s26
      %s27 = sphi 0, %s24
      %s28 = sphi 0, %s27
      %s44 = sphi 0, %s28
      %s50 = sphi 0, %s52
      %s53 = sphi 0, %s50
      %s54 = sphi 0, %s53
      %s70 = sphi 0, %s54
      %s74 = sphi 0, %s74
      %s76 = sphi 0, %s74
      %s77 = sphi 0, %s76
      %s91 = sphi 0, %s77
      %s95 = sphi 0, %s95
      %s97 = sphi 0, %s95
      %s98 = sphi 0, %s97
      %s112 = sphi 0, %s98
      %s116 = sphi 0, %s116
      %s118 = sphi 0, %s116
      %s119 = sphi 0, %s118
      %s133 = sphi 0, %s119
      %s139 = sphi 0, %s141
      %s142 = sphi 0, %s139
      %s143 = sphi 0, %s142
      %s159 = sphi 0, %s143
    $region4: #{duration_predictor_forward.1} parent=1 // loop_header_branch
      %17 = sbr.rel (%p15) target = $region8
    $region5: #{duration_predictor_forward.1} parent=1 // loop_body
      %s19 = ssub.s32 %s14, 1
      %s20 = ssub.s32 %s14, 2
      %s21 = sadd.s32 %s14, 1
      %s22 = ssub.s32 %s14, %s21
      %p23 = scmp.eq.s32.totalorder %s22, 0
      %s25 = sadd.s32 %s24, 1
      %s26 = scalar_select %p23, %s24, %s25
      %p29 = pneg %p23
      %p30 = scmp.eq.s32.totalorder %s14, 1
      %p31 = por %p29, %p30
      %p32 = scmp.ne.s32.totalorder %s24, %s27
      %p33 = scmp.eq.s32.totalorder %s14, 0
      %p34 = por %p32, %p33
      %p35 = scmp.ne.s32.totalorder %s24, %s27
      %p36 = scmp.eq.s32.totalorder %s19, 1
      %p37 = por %p35, %p36
      %p38 = scmp.ne.s32.totalorder %s27, %s28
      %p39 = scmp.eq.s32.totalorder %s19, 0
      %p40 = por %p38, %p39
      %p41 = scmp.ne.s32.totalorder %s27, %s28
      %p42 = scmp.eq.s32.totalorder %s20, 1
      %p43 = por %p41, %p42
      %p45 = scmp.ne.s32.totalorder %s28, %s44
      %p46 = scmp.eq.s32.totalorder %s20, 0
      %p47 = por %p45, %p46
      %s48 = ssub.s32 %s14, %s21
      %p49 = scmp.eq.s32.totalorder %s48, 0
      %s51 = sadd.s32 %s50, 1
      %s52 = scalar_select %p49, %s50, %s51
      %p55 = pneg %p49
      %p56 = scmp.eq.s32.totalorder %s14, 1
      %p57 = por %p55, %p56
      %p58 = scmp.ne.s32.totalorder %s50, %s53
      %p59 = scmp.eq.s32.totalorder %s14, 0
      %p60 = por %p58, %p59
      %p61 = scmp.ne.s32.totalorder %s50, %s53
      %p62 = scmp.eq.s32.totalorder %s19, 1
      %p63 = por %p61, %p62
      %p64 = scmp.ne.s32.totalorder %s53, %s54
      %p65 = scmp.eq.s32.totalorder %s19, 0
      %p66 = por %p64, %p65
      %p67 = scmp.ne.s32.totalorder %s53, %s54
      %p68 = scmp.eq.s32.totalorder %s20, 1
      %p69 = por %p67, %p68
      %p71 = scmp.ne.s32.totalorder %s54, %s70
      %p72 = scmp.eq.s32.totalorder %s20, 0
      %p73 = por %p71, %p72
      %s75 = sadd.s32 %s74, 1
      %p78 = scmp.eq.s32.totalorder %s14, 1
      %p79 = scmp.ne.s32.totalorder %s74, %s76
      %p80 = scmp.eq.s32.totalorder %s14, 0
      %p81 = por %p79, %p80
      %p82 = scmp.ne.s32.totalorder %s74, %s76
      %p83 = scmp.eq.s32.totalorder %s19, 1
      %p84 = por %p82, %p83
      %p85 = scmp.ne.s32.totalorder %s76, %s77
      %p86 = scmp.eq.s32.totalorder %s19, 0
      %p87 = por %p85, %p86
      %p88 = scmp.ne.s32.totalorder %s76, %s77
      %p89 = scmp.eq.s32.totalorder %s20, 1
      %p90 = por %p88, %p89
      %p92 = scmp.ne.s32.totalorder %s77, %s91
      %p93 = scmp.eq.s32.totalorder %s20, 0
      %p94 = por %p92, %p93
      %s96 = sadd.s32 %s95, 1
      %p99 = scmp.eq.s32.totalorder %s14, 1
      %p100 = scmp.ne.s32.totalorder %s95, %s97
      %p101 = scmp.eq.s32.totalorder %s14, 0
      %p102 = por %p100, %p101
      %p103 = scmp.ne.s32.totalorder %s95, %s97
      %p104 = scmp.eq.s32.totalorder %s19, 1
      %p105 = por %p103, %p104
      %p106 = scmp.ne.s32.totalorder %s97, %s98
      %p107 = scmp.eq.s32.totalorder %s19, 0
      %p108 = por %p106, %p107
      %p109 = scmp.ne.s32.totalorder %s97, %s98
      %p110 = scmp.eq.s32.totalorder %s20, 1
      %p111 = por %p109, %p110
      %p113 = scmp.ne.s32.totalorder %s98, %s112
      %p114 = scmp.eq.s32.totalorder %s20, 0
      %p115 = por %p113, %p114
      %s117 = sadd.s32 %s116, 1
      %p120 = scmp.eq.s32.totalorder %s14, 1
      %p121 = scmp.ne.s32.totalorder %s116, %s118
      %p122 = scmp.eq.s32.totalorder %s14, 0
      %p123 = por %p121, %p122
      %p124 = scmp.ne.s32.totalorder %s116, %s118
      %p125 = scmp.eq.s32.totalorder %s19, 1
      %p126 = por %p124, %p125
      %p127 = scmp.ne.s32.totalorder %s118, %s119
      %p128 = scmp.eq.s32.totalorder %s19, 0
      %p129 = por %p127, %p128
      %p130 = scmp.ne.s32.totalorder %s118, %s119
      %p131 = scmp.eq.s32.totalorder %s20, 1
      %p132 = por %p130, %p131
      %p134 = scmp.ne.s32.totalorder %s119, %s133
      %p135 = scmp.eq.s32.totalorder %s20, 0
      %p136 = por %p134, %p135
      %s137 = ssub.s32 %s14, %s21
      %p138 = scmp.eq.s32.totalorder %s137, 0
      %s140 = sadd.s32 %s139, 1
      %s141 = scalar_select %p138, %s139, %s140
      %p144 = pneg %p138
      %p145 = scmp.eq.s32.totalorder %s14, 1
      %p146 = por %p144, %p145
      %p147 = scmp.ne.s32.totalorder %s139, %s142
      %p148 = scmp.eq.s32.totalorder %s14, 0
      %p149 = por %p147, %p148
      %p150 = scmp.ne.s32.totalorder %s139, %s142
      %p151 = scmp.eq.s32.totalorder %s19, 1
      %p152 = por %p150, %p151
      %p153 = scmp.ne.s32.totalorder %s142, %s143
      %p154 = scmp.eq.s32.totalorder %s19, 0
      %p155 = por %p153, %p154
      %p156 = scmp.ne.s32.totalorder %s142, %s143
      %p157 = scmp.eq.s32.totalorder %s20, 1
      %p158 = por %p156, %p157
      %p160 = scmp.ne.s32.totalorder %s143, %s159
      %p161 = scmp.eq.s32.totalorder %s20, 0
      %p162 = por %p160, %p161
      %p163 = scmp.le.s32.totalorder 1, %s14
      %p164 = scmp.lt.s32.totalorder %s14, 3
      %p165 = pnand %p163, %p164
      %p166 = pneg %p165
      // Predicated region
      $region9: #{duration_predictor_forward.1} parent=5 // pred_check
        _
      $region10: #{duration_predictor_forward.1} parent=5 // pred_check_branch
        %168 = sbr.rel (%p165) target = $region12
      $region11: #{duration_predictor_forward.1} parent=5 // pred_region
        %s169 = ssub.s32 %s14, 1
        // Predicated region
        $region13: #{duration_predictor_forward.1} parent=11 // pred_check
          %p170 = pneg %p87
        $region14: #{duration_predictor_forward.1} parent=11 // pred_check_branch
          %172 = sbr.rel (%p170) target = $region16
        $region15: #{duration_predictor_forward.1} parent=11 // pred_region
          _
        $region16: #{duration_predictor_forward.1} parent=11 // pred_fallthru
          _
        // Predicated region
        $region17: #{duration_predictor_forward.1} parent=11 // pred_check
          %p173 = pneg %p108
        $region18: #{duration_predictor_forward.1} parent=11 // pred_check_branch
          %175 = sbr.rel (%p173) target = $region20
        $region19: #{duration_predictor_forward.1} parent=11 // pred_region
          _
        $region20: #{duration_predictor_forward.1} parent=11 // pred_fallthru
          _
        // Predicated region
        $region21: #{duration_predictor_forward.1} parent=11 // pred_check
          %p176 = pneg %p129
        $region22: #{duration_predictor_forward.1} parent=11 // pred_check_branch
          %178 = sbr.rel (%p176) target = $region24
        $region23: #{duration_predictor_forward.1} parent=11 // pred_region
          _
        $region24: #{duration_predictor_forward.1} parent=11 // pred_fallthru
          _
      $region12: #{duration_predictor_forward.1} parent=5 // pred_fallthru
        _
      %p179 = scmp.lt.s32.totalorder %s14, 2
      // Predicated region
      $region25: #{duration_predictor_forward.1} parent=5 // pred_check
        %p180 = pneg %p179
      $region26: #{duration_predictor_forward.1} parent=5 // pred_check_branch
        %182 = sbr.rel (%p180) target = $region28
      $region27: #{duration_predictor_forward.1} parent=5 // pred_region
        // Predicated region
        $region29: #{duration_predictor_forward.1} parent=27 // pred_check
          %p183 = pneg %p34
        $region30: #{duration_predictor_forward.1} parent=27 // pred_check_branch
          %185 = sbr.rel (%p183) target = $region32
        $region31: #{duration_predictor_forward.1} parent=27 // pred_region
          %p186 = scmp.lt.s32.totalorder %s14, 1
          %s187 = scalar_select %p186, %s14, 1
          %s188 = smul.addr %s187, 8
          %s189 = scalar_lea.vmem %s0, %s188
        $region32: #{duration_predictor_forward.1} parent=27 // pred_fallthru
          _
        // Predicated region
        $region33: #{duration_predictor_forward.1} parent=27 // pred_check
          %p190 = pneg %p60
        $region34: #{duration_predictor_forward.1} parent=27 // pred_check_branch
          %192 = sbr.rel (%p190) target = $region36
        $region35: #{duration_predictor_forward.1} parent=27 // pred_region
          %p193 = scmp.lt.s32.totalorder %s14, 1
          %s194 = scalar_select %p193, %s14, 1
          %s195 = scalar_lea.vmem %s1, %s194
        $region36: #{duration_predictor_forward.1} parent=27 // pred_fallthru
          _
      $region28: #{duration_predictor_forward.1} parent=5 // pred_fallthru
        _
      %p196 = scmp.le.s32.totalorder 1, %s14
      %p197 = scmp.lt.s32.totalorder %s14, 3
      %p198 = pnand %p196, %p197
      %p199 = pneg %p198
      // Predicated region
      $region37: #{duration_predictor_forward.1} parent=5 // pred_check
        _
      $region38: #{duration_predictor_forward.1} parent=5 // pred_check_branch
        %201 = sbr.rel (%p198) target = $region40
      $region39: #{duration_predictor_forward.1} parent=5 // pred_region
        %s202 = ssub.s32 %s14, 1
        %p203 = scmp.lt.s32.totalorder %s19, 1
        %s204 = scalar_select %p203, %s19, 1
        %s205 = smul.addr %s204, 8
        %s206 = scalar_lea.vmem %s0, %s205
        %p207 = pneg %p40
        %p208 = pneg %p37
        %p209 = scmp.lt.s32.totalorder %s19, 1
        %s210 = scalar_select %p209, %s19, 1
        %s211 = scalar_lea.vmem %s1, %s210
        %p212 = pneg %p66
        %p213 = pneg %p63
        %p214 = pneg %p87
        %p215 = pneg %p84
        %p216 = pneg %p108
        %p217 = pneg %p105
        %p218 = pneg %p129
        %p219 = pneg %p126
        %p220 = pneg %p155
        %p221 = pneg %p152
        %s222 = sand.u32 %s142, 1
        %s223 = scalar_lea.sflag [#allocation3], %s222
        %s224 = sand.u32 %s142, 1
        %s225 = scalar_lea.vmem [#allocation2], %s224
        %p226 = scmp.lt.s32.totalorder %s19, 1
        %s227 = scalar_select %p226, %s19, 1
        %s228 = smul.addr %s227, 8
        %s229 = scalar_lea.vmem %s0, %s228
        %p230 = scmp.lt.s32.totalorder %s19, 1
        %s231 = scalar_select %p230, %s19, 1
        %s232 = scalar_lea.vmem %s1, %s231
        %v233 = vld [vmem:[%s232] sm:$0x1]
        %v234 = vlaneseq
        %v235 = vand.u32 %v234, 127
        %vm236 = vcmp.ge.s32.totalorder %v235, 1
        %vm237 = vcmp.lt.s32.totalorder %v235, 127
        %v238 = vld [vmem:[%s4] sm:$0xff]
        %v239 = vld [vmem:[%s4 + $0x8] sm:$0xff]
        %v240 = vld [vmem:[%s4] sm:$0x1]
        %v241 = vld [vmem:[%s229] sm:$0xff]
        %v243 = vperm.slane %v233, 0
        %v245 = vmul.f32 %v241, %v243
        %246 = vrot.lane.b32.xlu0 %v245, 1
        %v247 = vpop.permute.xlu0 %246
        %v248 = vsel %vm236, 1, 0
        %vm249 = vcmp.eq.s32.totalorder %v248, 1
        %v250 = vsel %vm249, %v247, 0.0
        %251 = vrot.lane.b32.xlu0 %v245, 127
        %v252 = vpop.permute.xlu0 %251
        %v253 = vsel %vm237, 1, 0
        %vm254 = vcmp.eq.s32.totalorder %v253, 1
        %v255 = vsel %vm254, %v252, 0.0
        %v256 = vld [vmem:[%s2] sm:$0xff]
        %v257 = vld [vmem:[%s2 + $0x8] sm:$0xff]
        %259 = vset.pattern.permute.xlu0 0
        %260 = vperm.xlu0 %259, %v238
        %v261 = vpop.permute.xlu0 %260
        %264 = vset.pattern.permute.xlu0 0
        %265 = vperm.xlu0 %264, %v239
        %v266 = vpop.permute.xlu0 %265
        %vm268 = vcmask 195584
        %v270 = vsel %vm268, %v256, 0
        %v273 = vsel %vm268, %v257, 0
        %275 = vmatpush.msra.mxu0 0.0
        %276 = vmatpush.msra.mxu0 0.0
        %277 = vmatpush.msra.mxu0 0.0
        %278 = vmatpush.msra.mxu0 0.0
        %279 = vmatpush.msra.mxu0 0.0
        %280 = vmatpush.msra.mxu0 0.0
        %281 = vmatpush.msra.mxu0 0.0
        %282 = vmatpush.msra.mxu0 0.0
        %283 = vmatpush.msra.mxu0 0.0
        %284 = vmatpush.msra.mxu0 0.0
        %285 = vmatpush.msra.mxu0 0.0
        %286 = vmatpush.msra.mxu0 0.0
        %287 = vmatpush.msra.mxu0 0.0
        %288 = vmatpush.msra.mxu0 %v255
        %289 = vmatpush.msra.mxu0 %v245
        %290 = vmatpush.msra.mxu0 %v250
        %291 = vmatmul.f32.gmra.mxu0 %v270
        %v292 = vpop.f32.mrf.mxu0
        %v293 = vadd.f32 %v261, %v292
        %294 = vmatmul.f32.gmra.mxu0 %v273
        %v295 = vpop.f32.mrf.mxu0
        %v296 = vadd.f32 %v266, %v295
        %297 = vdwg.mxu0
        %v298 = vmax.f32 %v293, 0.0
        %v299 = vmax.f32 %v296, 0.0
        %v300 = vadd.f32 %v298, %v299
        %v301 = vrot.slane %v300, 4
        %v302 = vadd.f32 %v300, %v301
        %v303 = vrot.slane %v302, 2
        %v304 = vadd.f32 %v302, %v303
        %v305 = vrot.slane %v304, 1
        %v306 = vadd.f32 %v304, %v305
        %v307 = vrcp.pop 16.0
        %v308 = vmul.f32 16.0, %v307
        %v309 = vsub.f32 1.0, %v308
        %v310 = vmul.f32 %v307, %v309
        %v311 = vadd.f32 %v307, %v310
        %vm312 = vweird.f32 %v307
        %v313 = vsel %vm312, %v307, %v311
        %v314 = vmul.f32 %v306, %v313
        %v315 = vsub.f32 %v298, %v314
        %v316 = vsub.f32 %v299, %v314
        %v317 = vmul.f32 %v315, %v315
        %v318 = vmul.f32 %v316, %v316
        %v319 = vadd.f32 %v317, %v318
        %v320 = vrot.slane %v319, 4
        %v321 = vadd.f32 %v319, %v320
        %v322 = vrot.slane %v321, 2
        %v323 = vadd.f32 %v321, %v322
        %v324 = vrot.slane %v323, 1
        %v325 = vadd.f32 %v323, %v324
        %v326 = vmul.f32 %v325, %v313
        %v327 = vadd.f32 %v326, 1e-05
        %v328 = vrsqrt.pop %v327
        %v329 = vmul.f32 %v328, %v327
        %v330 = vmul.f32 %v329, %v328
        %v331 = vmul.f32 0.5, %v330
        %v332 = vsub.f32 1.5, %v331
        %v333 = vmul.f32 %v328, %v332
        %vm334 = vweird.f32 %v327
        %vm335 = vweird.f32 %v328
        %vm336 = vmor %vm334, %vm335
        %v337 = vsel %vm336, %v328, %v333
        %v338 = vmul.f32 %v315, %v337
        %v339 = vmul.f32 %v316, %v337
        %340 = vset.pattern.permute.xlu0 1
        %341 = vperm.xlu0 %340, %v238
        %v342 = vpop.permute.xlu0 %341
        %344 = vset.pattern.permute.xlu0 1
        %345 = vperm.xlu0 %344, %v239
        %v346 = vpop.permute.xlu0 %345
        %v348 = vmul.f32 %v342, %v338
        %v349 = vmul.f32 %v346, %v339
        %350 = vset.pattern.permute.xlu0 2
        %351 = vperm.xlu0 %350, %v238
        %v352 = vpop.permute.xlu0 %351
        %354 = vset.pattern.permute.xlu0 2
        %355 = vperm.xlu0 %354, %v239
        %v356 = vpop.permute.xlu0 %355
        %v358 = vadd.f32 %v348, %v352
        %v359 = vadd.f32 %v349, %v356
        %v360 = vmul.f32 %v358, %v243
        %v361 = vmul.f32 %v359, %v243
        %362 = vrot.lane.b32.xlu0 %v360, 1
        %v363 = vpop.permute.xlu0 %362
        %364 = vrot.lane.b32.xlu0 %v361, 1
        %v365 = vpop.permute.xlu0 %364
        %v366 = vsel %vm249, %v363, 0.0
        %v367 = vsel %vm249, %v365, 0.0
        %368 = vrot.lane.b32.xlu0 %v360, 127
        %v369 = vpop.permute.xlu0 %368
        %370 = vrot.lane.b32.xlu0 %v361, 127
        %v371 = vpop.permute.xlu0 %370
        %v372 = vsel %vm254, %v369, 0.0
        %v373 = vsel %vm254, %v371, 0.0
        %v374 = vld [vmem:[%s3] sm:$0xff]
        %v375 = vld [vmem:[%s3 + $0x8] sm:$0xff]
        %376 = vset.pattern.permute.xlu0 3
        %377 = vperm.xlu0 %376, %v238
        %v378 = vpop.permute.xlu0 %377
        %380 = vset.pattern.permute.xlu0 3
        %381 = vperm.xlu0 %380, %v239
        %v382 = vpop.permute.xlu0 %381
        %vm384 = vcmask 392192
        %v386 = vsel %vm384, %v374, 0
        %v389 = vsel %vm384, %v375, 0
        %391 = vmatpush.msra.mxu0 0.0
        %392 = vmatpush.msra.mxu0 0.0
        %393 = vmatpush.msra.mxu0 0.0
        %394 = vmatpush.msra.mxu0 0.0
        %395 = vmatpush.msra.mxu0 0.0
        %396 = vmatpush.msra.mxu0 0.0
        %397 = vmatpush.msra.mxu0 0.0
        %398 = vmatpush.msra.mxu0 0.0
        %399 = vmatpush.msra.mxu0 0.0
        %400 = vmatpush.msra.mxu0 0.0
        %401 = vmatpush.msra.mxu0 %v373
        %402 = vmatpush.msra.mxu0 %v372
        %403 = vmatpush.msra.mxu0 %v361
        %404 = vmatpush.msra.mxu0 %v360
        %405 = vmatpush.msra.mxu0 %v367
        %406 = vmatpush.msra.mxu0 %v366
        %407 = vmatmul.f32.gmra.mxu0 %v386
        %v408 = vpop.f32.mrf.mxu0
        %v409 = vadd.f32 %v378, %v408
        %410 = vmatmul.f32.gmra.mxu0 %v389
        %v411 = vpop.f32.mrf.mxu0
        %v412 = vadd.f32 %v382, %v411
        %413 = vdwg.mxu0
        %v414 = vmax.f32 %v409, 0.0
        %v415 = vmax.f32 %v412, 0.0
        %v416 = vadd.f32 %v414, %v415
        %v417 = vrot.slane %v416, 4
        %v418 = vadd.f32 %v416, %v417
        %v419 = vrot.slane %v418, 2
        %v420 = vadd.f32 %v418, %v419
        %v421 = vrot.slane %v420, 1
        %v422 = vadd.f32 %v420, %v421
        %v423 = vmul.f32 %v422, %v313
        %v424 = vsub.f32 %v414, %v423
        %v425 = vsub.f32 %v415, %v423
        %v426 = vmul.f32 %v424, %v424
        %v427 = vmul.f32 %v425, %v425
        %v428 = vadd.f32 %v426, %v427
        %v429 = vrot.slane %v428, 4
        %v430 = vadd.f32 %v428, %v429
        %v431 = vrot.slane %v430, 2
        %v432 = vadd.f32 %v430, %v431
        %v433 = vrot.slane %v432, 1
        %v434 = vadd.f32 %v432, %v433
        %v435 = vmul.f32 %v434, %v313
        %v436 = vadd.f32 %v435, 1e-05
        %v437 = vrsqrt.pop %v436
        %v438 = vmul.f32 %v437, %v436
        %v439 = vmul.f32 %v438, %v437
        %v440 = vmul.f32 0.5, %v439
        %v441 = vsub.f32 1.5, %v440
        %v442 = vmul.f32 %v437, %v441
        %vm443 = vweird.f32 %v436
        %vm444 = vweird.f32 %v437
        %vm445 = vmor %vm443, %vm444
        %v446 = vsel %vm445, %v437, %v442
        %v447 = vmul.f32 %v424, %v446
        %v448 = vmul.f32 %v425, %v446
        %449 = vset.pattern.permute.xlu0 4
        %450 = vperm.xlu0 %449, %v238
        %v451 = vpop.permute.xlu0 %450
        %453 = vset.pattern.permute.xlu0 4
        %454 = vperm.xlu0 %453, %v239
        %v455 = vpop.permute.xlu0 %454
        %v457 = vmul.f32 %v451, %v447
        %v458 = vmul.f32 %v455, %v448
        %v459 = vadd.f32 %v457, %v458
        %v460 = vrot.slane %v459, 4
        %v461 = vadd.f32 %v459, %v460
        %v462 = vrot.slane %v461, 2
        %v463 = vadd.f32 %v461, %v462
        %v464 = vrot.slane %v463, 1
        %v465 = vadd.f32 %v463, %v464
        %467 = vset.pattern.permute.xlu0 5
        %468 = vperm.xlu0 %467, %v240
        %v469 = vpop.permute.xlu0 %468
        %v471 = vadd.f32 %v465, %v469
        %v472 = vmul.f32 %v471, %v233
        %473 = vst [vmem:[%s225] sm:$0x1] %v472
        %s474 = sand.u32 %s142, 1
        %s475 = scalar_lea.sflag [#allocation3], %s474
        %s476 = sand.u32 %s142, 1
        %s477 = scalar_lea.vmem [#allocation2], %s476
        // Predicated region
        $region41: #{duration_predictor_forward.1} parent=39 // pred_check
          %p478 = pneg %p152
        $region42: #{duration_predictor_forward.1} parent=39 // pred_check_branch
          %480 = sbr.rel (%p478) target = $region44
        $region43: #{duration_predictor_forward.1} parent=39 // pred_region
          %482 = vsyncadd %s475, 0
          %s483 = scalar_lea.hbm %s5, %s19
          %s485 = sshll.u32 %s477, 4
          %s486 = int_to_ptr.vmem [resolvable:$true] %s485
          %s487 = sshll.u32 %s483, 4
          %s488 = int_to_ptr.hbm [resolvable:$true] %s487
          %490 = dma.vmem_to_hbm [thread:$0]  %s486, 16, %s488, %s475
        $region44: #{duration_predictor_forward.1} parent=39 // pred_fallthru
          _
      $region40: #{duration_predictor_forward.1} parent=5 // pred_fallthru
        _
      %p491 = scmp.le.s32.totalorder 2, %s14
      // Predicated region
      $region45: #{duration_predictor_forward.1} parent=5 // pred_check
        %p492 = pneg %p491
      $region46: #{duration_predictor_forward.1} parent=5 // pred_check_branch
        %494 = sbr.rel (%p492) target = $region48
      $region47: #{duration_predictor_forward.1} parent=5 // pred_region
        %s495 = ssub.s32 %s14, 2
        // Predicated region
        $region49: #{duration_predictor_forward.1} parent=47 // pred_check
          %p496 = pneg %p158
        $region50: #{duration_predictor_forward.1} parent=47 // pred_check_branch
          %498 = sbr.rel (%p496) target = $region52
        $region51: #{duration_predictor_forward.1} parent=47 // pred_region
          %s499 = sand.u32 %s143, 1
          %s500 = scalar_lea.sflag [#allocation3], %s499
          %s501 = sand.u32 %s143, 1
          %s502 = scalar_lea.vmem [#allocation2], %s501
          %504 = dma.done %s500, 16
        $region52: #{duration_predictor_forward.1} parent=47 // pred_fallthru
          _
      $region48: #{duration_predictor_forward.1} parent=5 // pred_fallthru
        _
    $region6: #{duration_predictor_forward.1} parent=1 // loop_footer
      %s18 = sadd.s32 1, %s14
    $region7: #{duration_predictor_forward.1} parent=1 // loop_footer_branch
      %13 = sbr.rel target = $region3
    $region8: #{duration_predictor_forward.1} parent=1 // loop_exit
      _
    %505 = vsyncpa [#allocation3], 1
    %s506 = scalar_lea.sflag [#allocation3], 1
    %507 = vsyncpa %s506, 1

</llo_original>
